<compile_context>
chip_gen: v5e
topology: v5e:2x2
jax: 0.10.0
libtpu: 0.0.40
codegen_flags: <defaults>
</compile_context>

<pallas_src>
import jax
import jax.numpy as jnp
from jax.experimental import pallas as pl
from jax.experimental.pallas import tpu as pltpu


def _roundup(x, m):
    return ((x + m - 1) // m) * m


def _sublane_multiple(dtype):
    # vreg second-minor (sublane) packing: 8 rows for 32-bit, 16 for 16-bit, 32 for 8-bit.
    return 8 * max(1, 4 // jnp.dtype(dtype).itemsize)


def _ortho_pool_kernel(x_ref, f_ref, o_ref):
    # x_ref: (bt, C, HW) activation tile in its native dtype (bf16 stays bf16 through DMA)
    # f_ref: (C, HW)     shared orthonormal filters, pre-cast to f32 in the wrapper
    # o_ref: (bt, C)     output slab
    xf = x_ref[...].astype(jnp.float32)
    # Implicit broadcast of (C, HW) over the leading bt dim; VPU elementwise multiply,
    # per-128-lane partial adds on the VPU, final cross-lane reduce on the XLU.
    prod = xf * f_ref[...]
    o_ref[...] = jnp.sum(prod, axis=-1).astype(o_ref.dtype)


def _choose_batch_tile(B, padded_bytes_per_b, target_tile_bytes, row_align):
    """How many batch elements per grid step, sized by *padded* VMEM bytes."""
    bt = max(1, int(target_tile_bytes) // max(1, int(padded_bytes_per_b)))
    if bt >= B:
        # Whole batch fits one tile.  If B is large enough, still split into >= 2 blocks
        # (each a multiple of row_align rows) so the "parallel" grid axis can shard across
        # both v7x TensorCores; on single-TC v5e/v6e the extra step costs only ~0.35 us.
        if B >= 2 * row_align:
            return min(B, _roundup((B + 1) // 2, row_align))
        return B
    if bt >= row_align:
        bt = (bt // row_align) * row_align   # keep (bt, C) output blocks sublane-aligned
    else:
        bt = min(B, row_align)               # one padded batch element is huge; stay aligned
    return min(bt, B)


def ortho_pool(x, filt, *, target_tile_bytes=8 << 20):
    """Pallas equivalent of GramSchmidtTransform.forward (matching spatial size).

    x:    (B, C, H, W)
    filt: (C, H, W)
    returns (B, C, 1, 1)
    """
    B, C, H, W = x.shape
    HW = H * W
    x2 = x.reshape(B, C, HW)                        # native dtype through the DMA
    f2 = filt.reshape(C, HW).astype(jnp.float32)    # DMA'd once; pre-cast outside the kernel

    itemsize = jnp.dtype(x.dtype).itemsize
    sub_in = _sublane_multiple(x.dtype)
    # Honest, padded VMEM footprint of one batch element of the activation tile.
    padded_b = _roundup(C, sub_in) * _roundup(HW, 128) * itemsize

    # Pick the tile and compute the real VMEM requirement; shrink the tile if it would
    # exceed the 48 MiB cap (leaves headroom even on 64 MiB/TC v7x).
    target = int(target_tile_bytes)
    while True:
        bt = _choose_batch_tile(B, padded_b, target, sub_in)
        filt_bytes = 2 * _roundup(C, 8) * _roundup(HW, 128) * 4        # conservative x2
        out_bytes = 2 * _roundup(bt, sub_in) * _roundup(C, 128) * itemsize
        f32_tmp = 2 * bt * _roundup(C, 8) * _roundup(HW, 128) * 4      # in-kernel cast + product
        need = 2 * bt * padded_b + filt_bytes + out_bytes + f32_tmp + (8 << 20)
        if need <= (48 << 20) or bt <= sub_in or target <= (1 << 20):
            break
        target //= 2
    vmem_limit = int(min(48 << 20, max(16 << 20, need)))

    nb = pl.cdiv(B, bt)
    # No jnp.pad of the activation: the ragged last block (if any) reads unspecified rows
    # past B (never observed — rows are independent) and its OOB output rows are masked on
    # store by Pallas, so total HBM traffic stays at exactly one pass over x.

    out = pl.pallas_call(
        _ortho_pool_kernel,
        out_shape=jax.ShapeDtypeStruct((B, C), x.dtype),
        grid=(nb,),
        in_specs=[
            # Big per-step activation tile: last two dims equal the full array extents, so
            # the (8, 128) block constraint is satisfied for any C/HW.
            pl.BlockSpec((bt, C, HW), lambda b: (b, 0, 0)),
            # Shared filters; constant block index -> fetched once, reused every step.
            # TODO(synk): pipeline_mode=pl.Buffered(1) would drop the dead second pipeline
            # buffer for this constant-index input (a few MiB on v7x for large C*HW); left
            # out to stay conservative across jax versions.
            pl.BlockSpec((C, HW), lambda b: (0, 0)),
        ],
        out_specs=pl.BlockSpec((bt, C), lambda b: (b, 0)),
        compiler_params=pltpu.CompilerParams(
            dimension_semantics=("parallel",),   # megacore-shard the batch-block axis (v7x)
            vmem_limit_bytes=vmem_limit,
        ),
    )(x2, f2)

    return out.reshape(B, C, 1, 1)


def gram_schmidt_transform(filt, x):
    """Mirrors GramSchmidtTransform.forward: optional adaptive pooling + ortho pooling."""
    C, FH, FW = filt.shape
    B, Cx, H, W = x.shape
    if (H, W) != (FH, FW):
        if H % FH == 0 and W % FW == 0:
            # adaptive_avg_pool2d for integer-divisible sizes (plain JAX glue)
            x = x.reshape(B, Cx, FH, H // FH, FW, W // FW).mean(axis=(3, 5))
        else:
            # TODO(synk): general adaptive_avg_pool2d (non-divisible sizes) not implemented.
            raise NotImplementedError("non-divisible adaptive pooling not supported")
    return ortho_pool(x, filt)


def attention_forward(filt, x):
    """Mirrors Attention.forward: loop until spatial size is 1, then flatten."""
    while x.shape[-1] > 1:   # same condition as PyTorch (checks last dim only)
        x = gram_schmidt_transform(filt, x)
    b = x.shape[0]
    return x.reshape(b, -1)


def make_ortho_filters(key, c, h, w):
    """Deterministic orthonormal per-channel filters (Gram-Schmidt via QR)."""
    n = h * w
    assert c <= n, "synthetic setup assumes C <= H*W"
    # TODO(synk): original code tiles groups of orthogonal filters when C > H*W.
    m = jax.random.normal(key, (n, n), dtype=jnp.float32)
    q, _ = jnp.linalg.qr(m)
    return q[:, :c].T.reshape(c, h, w)


if __name__ == "__main__":
    key = jax.random.PRNGKey(0)
    kf, kx = jax.random.split(key)

    B, C, H, W = 2, 4, 16, 16
    filt = make_ortho_filters(kf, C, H, W)                         # (C, H, W)
    x = jax.random.normal(kx, (B, C, H, W), dtype=jnp.float32)     # NCHW input

    out = attention_forward(filt, x)
    out = jax.block_until_ready(out)

    # Pure-JAX reference of the PyTorch forward
    ref = (filt[None, :, :, :] * x).sum(axis=(-1, -2)).reshape(B, -1)

    assert out.shape == (B, C), out.shape
    assert jnp.allclose(out, ref, atol=1e-4, rtol=1e-4), "mismatch vs reference"
    print("KERNEL_OK")
</pallas_src>

<mosaic_0001>
module attributes {stable_mosaic.version = 11 : i64} {
  func.func @_ortho_pool_kernel(%arg0: i32, %arg1: memref<2x4x256xf32, #tpu.memory_space<vmem>>, %arg2: memref<4x256xf32, #tpu.memory_space<vmem>>, %arg3: memref<2x4xf32, #tpu.memory_space<vmem>>) attributes {dimension_semantics = [#tpu.dimension_semantics<parallel>], iteration_bounds = array<i64: 1>, scalar_prefetch = 0 : i64, scratch_operands = 0 : i64, tpu.core_type = #tpu.core_type<tc>, window_params = [{transform_indices = @transform_0, window_bounds = array<i64: 2, 4, 256>}, {pipeline_mode = #tpu.pipeline_mode<synchronous>, transform_indices = @transform_1, window_bounds = array<i64: 4, 256>}, {transform_indices = @transform_2, window_bounds = array<i64: 2, 4>}]} {
    %c0 = arith.constant 0 : index
    %c0_0 = arith.constant 0 : index
    %c0_1 = arith.constant 0 : index
    %0 = vector.load %arg1[%c0, %c0_0, %c0_1] : memref<2x4x256xf32, #tpu.memory_space<vmem>>, vector<2x4x256xf32>
    %c0_2 = arith.constant 0 : index
    %c0_3 = arith.constant 0 : index
    %1 = vector.load %arg2[%c0_2, %c0_3] : memref<4x256xf32, #tpu.memory_space<vmem>>, vector<4x256xf32>
    %2 = vector.shape_cast %1 : vector<4x256xf32> to vector<1x4x256xf32>
    %3 = vector.broadcast %2 : vector<1x4x256xf32> to vector<2x4x256xf32>
    %4 = arith.mulf %0, %3 : vector<2x4x256xf32>
    %cst = arith.constant dense<0.000000e+00> : vector<2x4xf32>
    %5 = vector.multi_reduction <add>, %4, %cst [2] : vector<2x4x256xf32> to vector<2x4xf32>
    %c0_4 = arith.constant 0 : index
    %c0_5 = arith.constant 0 : index
    %6 = vector.load %arg3[%c0_4, %c0_5] : memref<2x4xf32, #tpu.memory_space<vmem>>, vector<2x4xf32>
    tpu.vector_store %arg3[%c0_4, %c0_5], %5 {strides = array<i32>} : memref<2x4xf32, #tpu.memory_space<vmem>>, vector<2x4xf32>,
    return
  }
  func.func @transform_0(%arg0: i32) -> (i32, i32, i32) {
    %c0_i32 = arith.constant 0 : i32
    %c0_i32_0 = arith.constant 0 : i32
    %c0_i32_1 = arith.constant 0 : i32
    return %arg0, %c0_i32, %c0_i32_0 : i32, i32, i32
  }
  func.func @transform_1(%arg0: i32) -> (i32, i32) {
    %c0_i32 = arith.constant 0 : i32
    %c0_i32_0 = arith.constant 0 : i32
    %c0_i32_1 = arith.constant 0 : i32
    return %c0_i32, %c0_i32_0 : i32, i32
  }
  func.func @transform_2(%arg0: i32) -> (i32, i32) {
    %c0_i32 = arith.constant 0 : i32
    %c0_i32_0 = arith.constant 0 : i32
    return %arg0, %c0_i32 : i32, i32
  }
}

</mosaic_0001>

<llo_original>
// kernel: tpu_custom_call.1
$region0: #{tpu_custom_call.1}
  #allocation0 [shape = 'u32[]', space=smem, size = 0x4, offset = 0x4, fixed_abs, tag = 'smem constant byte address 0x4 - core index']
  #allocation1 [shape = 'u32[72,128]{1,0:T(1,128)}', space=vmem, size = 0x9000, scoped, tag = 'internal scratch']
  %s0 = inlined_call_operand.hbm [shape: f32[2,4,256], index: 0, kind: input, shape index: {}]
  %s1 = inlined_call_operand.hbm [shape: f32[4,256], index: 1, kind: input, shape index: {}]
  %s2 = inlined_call_operand.hbm [shape: f32[2,4], index: 2, kind: output, shape index: {}]
  %s3 = sld [smem:[#allocation0]]
  $region26: #{tpu_custom_call.1} parent=0
    _
  %s5 = ssub.s32 1, %s3
  %s6 = scalar_select 0, %s5, %s3
  $region1: #{tpu_custom_call.1} parent=0
    #allocation2 [shape = 'u8[8192]{0}', space=vmem, size = 0x2000, scoped, tag = 'input window, operand 0, single buffered']
    #allocation3 [shape = 's32[1]{0}', space=sflag, size = 0x4, scoped, tag = 'scoped memory for tpu_custom_call.1']
    #allocation4 [shape = 's32[1]{0}', space=sflag, size = 0x4, scoped, tag = 'scoped memory for tpu_custom_call.1']
    #allocation5 [shape = 'u8[4096]{0}', space=vmem, size = 0x1000, scoped, tag = 'input window, operand 1, single buffered']
    #allocation6 [shape = 's32[1]{0}', space=sflag, size = 0x4, scoped, tag = 'scoped memory for tpu_custom_call.1']
    #allocation7 [shape = 'u8[1024]{0}', space=vmem, size = 0x400, scoped, tag = 'output window, operand 0, single buffered']
    %7 = vsyncpa [#allocation3], 0
    %8 = vsyncpa [#allocation6], 0
    %9 = vsyncpa [#allocation4], 0
    // Predicated region
    $region2: #{tpu_custom_call.1} parent=1 // pred_check
      _
    $region3: #{tpu_custom_call.1} parent=1 // pred_check_branch
      %11 = sbr.rel (0) target = $region5
    $region4: #{tpu_custom_call.1} parent=1 // pred_region
      %13 = vsyncadd [#allocation3], 0
      %s14 = sshll.u32 %s0, 4
      %s15 = int_to_ptr.hbm [resolvable:$true] %s14
      %s16 = sshll.u32 [#allocation2], 4
      %s17 = int_to_ptr.vmem [resolvable:$true] %s16
      %22 = dma.hbm_to_vmem [thread:$0]  %s15, 256, %s17, [#allocation3], 128, 128, 8
    $region5: #{tpu_custom_call.1} parent=1 // pred_fallthru
      _
    // Predicated region
    $region6: #{tpu_custom_call.1} parent=1 // pred_check
      _
    $region7: #{tpu_custom_call.1} parent=1 // pred_check_branch
      %24 = sbr.rel (0) target = $region9
    $region8: #{tpu_custom_call.1} parent=1 // pred_region
      %26 = vsyncadd [#allocation6], 0
      %s28 = sshll.u32 %s1, 4
      %s29 = int_to_ptr.hbm [resolvable:$true] %s28
      %s30 = sshll.u32 [#allocation5], 4
      %s31 = int_to_ptr.vmem [resolvable:$true] %s30
      %33 = dma.hbm_to_vmem [thread:$0]  %s29, 128, %s31, [#allocation6]
    $region9: #{tpu_custom_call.1} parent=1 // pred_fallthru
      _
    // Predicated region
    $region10: #{tpu_custom_call.1} parent=1 // pred_check
      _
    $region11: #{tpu_custom_call.1} parent=1 // pred_check_branch
      %35 = sbr.rel (0) target = $region13
    $region12: #{tpu_custom_call.1} parent=1 // pred_region
      %37 = dma.done [#allocation3], 256
    $region13: #{tpu_custom_call.1} parent=1 // pred_fallthru
      _
    // Predicated region
    $region14: #{tpu_custom_call.1} parent=1 // pred_check
      _
    $region15: #{tpu_custom_call.1} parent=1 // pred_check_branch
      %39 = sbr.rel (0) target = $region17
    $region16: #{tpu_custom_call.1} parent=1 // pred_region
      %41 = dma.done [#allocation6], 128
    $region17: #{tpu_custom_call.1} parent=1 // pred_fallthru
      _
    %v42 = vld [vmem:[#allocation2] sm:$0xff]
    %v43 = vld [vmem:[#allocation2 + $0x8] sm:$0xff]
    %v44 = vld [vmem:[#allocation5] sm:$0xff]
    %v45 = vmul.f32 %v42, %v44
    %v46 = vmul.f32 %v43, %v44
    %49 = vst [vmem:[#allocation1] ss:$2 sm:$0xff] %v45
    %v50 = vld.sshfl [vmem:[#allocation1] sm:$0xff pattern:$0x75316420]
    %v51 = vld.sshfl [vmem:[#allocation1 + $0x8] sm:$0xff pattern:$0x75316420]
    %s52 = scalar_lea.vmem [#allocation1], 16
    %53 = vst [vmem:[%s52] ss:$2 sm:$0xff] %v46
    %v54 = vld.sshfl [vmem:[#allocation1 + $0x10] sm:$0xff pattern:$0x75316420]
    %v55 = vld.sshfl [vmem:[#allocation1 + $0x18] sm:$0xff pattern:$0x75316420]
    %vm60 = vcmask 1043456
    %v61 = vsel %vm60, %v50, 0.0
    %v62 = vsel %vm60, %v51, 0.0
    %v63 = vadd.f32 %v61, %v62
    %64 = vadd.xlane.f32.xlu0 %v63
    %v65 = vpop.xlane.xlu0 %64
    %v66 = vsel %vm60, %v54, 0.0
    %v67 = vsel %vm60, %v55, 0.0
    %v68 = vadd.f32 %v66, %v67
    %69 = vadd.xlane.f32.xlu0 %v68
    %v70 = vpop.xlane.xlu0 %69
    %v73 = vlaneseq
    %v74 = vand.u32 %v73, 127
    %v75 = vperm.slane %v65, %v74
    %v76 = vperm.slane %v70, %v74
    %vm77 = vcmask 1041409
    %v78 = vsel %vm77, %v76, %v75
    %vm80 = vcmask 25600
    %81 = vst.msk [vmem:[#allocation7] sm:$0x3] %vm80, %v78
    // Predicated region
    $region18: #{tpu_custom_call.1} parent=1 // pred_check
      _
    $region19: #{tpu_custom_call.1} parent=1 // pred_check_branch
      %83 = sbr.rel (0) target = $region21
    $region20: #{tpu_custom_call.1} parent=1 // pred_region
      %85 = vsyncadd [#allocation4], 0
      %s87 = sshll.u32 [#allocation7], 4
      %s88 = int_to_ptr.vmem [resolvable:$true] %s87
      %s89 = sshll.u32 %s2, 4
      %s90 = int_to_ptr.hbm [resolvable:$true] %s89
      %92 = dma.vmem_to_hbm [thread:$0]  %s88, 32, %s90, [#allocation4]
    $region21: #{tpu_custom_call.1} parent=1 // pred_fallthru
      _
    // Predicated region
    $region22: #{tpu_custom_call.1} parent=1 // pred_check
      _
    $region23: #{tpu_custom_call.1} parent=1 // pred_check_branch
      %94 = sbr.rel (0) target = $region25
    $region24: #{tpu_custom_call.1} parent=1 // pred_region
      %96 = dma.done [#allocation4], 32
    $region25: #{tpu_custom_call.1} parent=1 // pred_fallthru
      _
    %97 = vsyncpa [#allocation3], 1
    %98 = vsyncpa [#allocation6], 1
    %99 = vsyncpa [#allocation4], 1

</llo_original>
